<compile_context>
chip_gen: v7x
topology: tpu7x:2x2x1
jax: 0.10.0
libtpu: 0.0.40
codegen_flags: <defaults>
</compile_context>

<pallas_src>
import numpy as np
import jax
import jax.numpy as jnp
from jax.experimental import pallas as pl
from jax.experimental.pallas import tpu as pltpu


# ----- Model config: ConvNet(in_dim=32, out_dim=10, channel_sizes=[4, 8]) -----
IN_DIM = 32
OUT_DIM = 10
CHANNELS = (4, 8)
N_BATCH = 2
H = 128                     # padded lane width for hidden activations / output
TB = 256                    # batch tile for the gridded variant (fits v7x scoped VMEM)


def _out_dim(n, k, s):
    # mirrors get_output_dim in the PyTorch module
    return (n - (k - 1) - 1) // s + 1


L1 = _out_dim(IN_DIM, 3, 1)   # after conv1           -> 30
P1 = _out_dim(L1, 2, 2)       # after pool1           -> 15
L2 = _out_dim(P1, 3, 1)       # after conv2           -> 13
P2 = _out_dim(L2, 2, 2)       # after pool2           -> 6
F2 = CHANNELS[1] * P2         # Linear in_features    -> 48


# ----------------------------- Pallas kernel ---------------------------------
def convnet_kernel(x_ref, w1_ref, w2_ref, wfc_ref, out_ref):
    # In-kernel f32 -> bf16 cast of the input tile (one VPU op; avoids a standalone
    # convert HLO and an extra HBM round trip of x before the pallas_call).
    x = x_ref[...].astype(jnp.bfloat16)                                  # (TB, 32)
    # conv1 evaluated at even (cols [0:H)) and odd (cols [H:2H)) pool candidates
    y1 = jnp.dot(x, w1_ref[...], preferred_element_type=jnp.float32)     # (TB, 2H)
    # MaxPool1d(2,2) == max of the two lane-aligned halves, then ReLU (f32 compare, then cast)
    s1 = jnp.maximum(jnp.maximum(y1[:, :H], y1[:, H:]), 0.0).astype(jnp.bfloat16)
    # conv2 (even | odd), pool, ReLU
    y2 = jnp.dot(s1, w2_ref[...], preferred_element_type=jnp.float32)    # (TB, 2H)
    s2 = jnp.maximum(jnp.maximum(y2[:, :H], y2[:, H:]), 0.0).astype(jnp.bfloat16)
    # Flatten is a no-op in this layout; final Linear (no bias), lane-dense 128-wide out.
    out_ref[...] = jnp.dot(s2, wfc_ref[...],
                           preferred_element_type=jnp.float32).astype(out_ref.dtype)


# ------------------------- parameter packing (host, once) ---------------------
def _fused_conv_pool_matrix(w, in_len, rows_pad, half_pad):
    """Matrix M of shape (rows_pad, 2*half_pad) s.t. for a channel-major flattened input
    row x (x[ci*in_len + l]), (x @ M)[:, parity*half_pad + co*pooled + p] equals the
    Conv1d(stride=1, no bias) output of channel co at position 2*p + parity — i.e. the
    two MaxPool1d(2,2) candidates live in lane-aligned halves.  Unused rows/cols are 0."""
    w = np.asarray(w, dtype=np.float32)
    c_out, c_in, k = w.shape
    conv_len = in_len - (k - 1)
    pooled = _out_dim(conv_len, 2, 2)
    m = np.zeros((rows_pad, 2 * half_pad), dtype=np.float32)
    for parity in range(2):
        for co in range(c_out):
            for ci in range(c_in):
                for kk in range(k):
                    for p in range(pooled):
                        l = 2 * p + parity + kk
                        m[ci * in_len + l, parity * half_pad + co * pooled + p] = w[co, ci, kk]
    return m


def build_packed_params(w1, w2, wfc):
    """Run ONCE: pack conv/pool Toeplitz matrices and the Linear weight as bf16."""
    w1f = _fused_conv_pool_matrix(w1, IN_DIM, IN_DIM, H)   # (32, 256)
    w2f = _fused_conv_pool_matrix(w2, P1, H, H)            # (128, 256)
    wfcp = np.zeros((H, H), dtype=np.float32)              # (128, 128), lane-dense out
    wfcp[:F2, :OUT_DIM] = np.asarray(wfc, np.float32).T
    return (jnp.asarray(w1f, jnp.bfloat16),
            jnp.asarray(w2f, jnp.bfloat16),
            jnp.asarray(wfcp, jnp.bfloat16))


def _cost_estimate(n, out_dtype_bytes):
    flops = 2 * n * (IN_DIM * 2 * H + H * 2 * H + H * H)
    bytes_accessed = (n * IN_DIM * 4                                   # x (f32)
                      + (IN_DIM * 2 * H + H * 2 * H + H * H) * 2       # bf16 weights
                      + n * H * out_dtype_bytes)                       # output
    return pl.CostEstimate(flops=flops, transcendentals=0, bytes_accessed=bytes_accessed)


# --------------------- jitted forward (small batch, no grid) ------------------
@jax.jit
def convnet_forward(x_ncl, w1f, w2f, wfcp):
    """x_ncl: (N, 1, IN_DIM) float32 (PyTorch NCL layout, in_channels == 1).
    Returns (N, OUT_DIM) f32."""
    # NOTE: assumes in_channels == 1; for c_in > 1 flatten channel-major (ci*IN_DIM + l)
    # to match _fused_conv_pool_matrix's row layout.
    n = x_ncl.shape[0]
    x2d = x_ncl.reshape(n, IN_DIM)                          # stays f32; cast is in-kernel
    n_pad = max(8, -(-n // 8) * 8)                          # full sublane tile -> unmasked stores
    if n_pad != n:
        x2d = jnp.pad(x2d, ((0, n_pad - n), (0, 0)))

    vmem = lambda: pl.BlockSpec(memory_space=pltpu.MemorySpace.VMEM)
    out = pl.pallas_call(
        convnet_kernel,
        out_shape=jax.ShapeDtypeStruct((n_pad, H), jnp.float32),
        in_specs=[vmem(), vmem(), vmem(), vmem()],
        out_specs=vmem(),
        cost_estimate=_cost_estimate(n_pad, 4),
    )(x2d, w1f, w2f, wfcp)
    # Single slice; left inside the jit so it can fuse into any downstream consumer.
    return out[:n, :OUT_DIM]


# ------------------- jitted forward (large batch, gridded) --------------------
@jax.jit
def convnet_forward_batched(x_ncl, w1f, w2f, wfcp):
    """Gridded variant for real batch sizes: batch tiled with TB, weights pinned
    VMEM-resident, batch axis marked "parallel" (both v7x TCs), bf16 output to halve
    HBM writeback.  Returns (N, OUT_DIM) f32."""
    n = x_ncl.shape[0]
    x2d = x_ncl.reshape(n, IN_DIM)                          # f32; cast is in-kernel
    n_pad = pl.cdiv(n, TB) * TB
    if n_pad != n:
        x2d = jnp.pad(x2d, ((0, n_pad - n), (0, 0)))

    out = pl.pallas_call(
        convnet_kernel,
        out_shape=jax.ShapeDtypeStruct((n_pad, H), jnp.bfloat16),
        grid=(n_pad // TB,),
        in_specs=[pl.BlockSpec((TB, IN_DIM), lambda i: (i, 0)),
                  pl.BlockSpec((IN_DIM, 2 * H), lambda i: (0, 0)),
                  pl.BlockSpec((H, 2 * H), lambda i: (0, 0)),
                  pl.BlockSpec((H, H), lambda i: (0, 0))],
        out_specs=pl.BlockSpec((TB, H), lambda i: (i, 0)),
        compiler_params=pltpu.CompilerParams(dimension_semantics=("parallel",)),
        cost_estimate=_cost_estimate(n_pad, 2),
    )(x2d, w1f, w2f, wfcp)
    return out[:n, :OUT_DIM].astype(jnp.float32)


# ------------------------- pure-JAX reference ---------------------------------
def convnet_reference(x_ncl, w1, w2, wfc):
    def conv1d(inp, w):  # inp (N, Cin, L), w (Cout, Cin, K), stride 1, no bias
        k = w.shape[-1]
        lo = inp.shape[-1] - k + 1
        return sum(jnp.einsum('ncl,oc->nol', inp[:, :, kk:kk + lo], w[:, :, kk])
                   for kk in range(k))

    def maxpool2(y):  # MaxPool1d(kernel_size=2, stride=2)
        n, c, l = y.shape
        p = l // 2
        return y[:, :, :2 * p].reshape(n, c, p, 2).max(axis=-1)

    h = jax.nn.relu(maxpool2(conv1d(x_ncl, w1)))
    h = jax.nn.relu(maxpool2(conv1d(h, w2)))
    h = h.reshape(h.shape[0], -1)
    return h @ wfc.T


# ----------------------------------- main --------------------------------------
if __name__ == "__main__":
    key = jax.random.PRNGKey(0)
    k1, k2, k3, kx, kb = jax.random.split(key, 5)

    # Deterministic synthetic parameters (shapes from ConvNet.__init__)
    w1 = jax.random.normal(k1, (CHANNELS[0], 1, 3), jnp.float32) * 0.3            # Conv1d #1
    w2 = jax.random.normal(k2, (CHANNELS[1], CHANNELS[0], 3), jnp.float32) * 0.3  # Conv1d #2
    wfc = jax.random.normal(k3, (OUT_DIM, F2), jnp.float32) * 0.1                 # Linear

    # Pack weights once (host).
    w1f, w2f, wfcp = build_packed_params(w1, w2, wfc)

    # --- small-batch path (the module's nominal use: N=2) ---
    x = jax.random.normal(kx, (N_BATCH, 1, IN_DIM), jnp.float32)                  # (N, C=1, L)
    out = jax.block_until_ready(convnet_forward(x, w1f, w2f, wfcp))
    ref = jax.block_until_ready(convnet_reference(x, w1, w2, wfc))
    np.testing.assert_allclose(np.asarray(out), np.asarray(ref), rtol=2e-2, atol=2e-2)

    # --- gridded large-batch path (exercises TB tiling / parallel batch axis) ---
    xb = jax.random.normal(kb, (1024, 1, IN_DIM), jnp.float32)
    outb = jax.block_until_ready(convnet_forward_batched(xb, w1f, w2f, wfcp))
    refb = jax.block_until_ready(convnet_reference(xb, w1, w2, wfc))
    np.testing.assert_allclose(np.asarray(outb), np.asarray(refb), rtol=3e-2, atol=3e-2)

    print("KERNEL_OK")
</pallas_src>

<mosaic_0001>
module attributes {stable_mosaic.version = 11 : i64} {
  func.func @convnet_kernel(%arg0: memref<8x32xf32, #tpu.memory_space<vmem>>, %arg1: memref<32x256xbf16, #tpu.memory_space<vmem>>, %arg2: memref<128x256xbf16, #tpu.memory_space<vmem>>, %arg3: memref<128x128xbf16, #tpu.memory_space<vmem>>, %arg4: memref<8x128xf32, #tpu.memory_space<vmem>>) attributes {dimension_semantics = [], scalar_prefetch = 0 : i64, scratch_operands = 0 : i64, tpu.core_type = #tpu.core_type<tc>} {
    %c0 = arith.constant 0 : index
    %c0_0 = arith.constant 0 : index
    %0 = vector.load %arg0[%c0, %c0_0] : memref<8x32xf32, #tpu.memory_space<vmem>>, vector<8x32xf32>
    %1 = arith.truncf %0 : vector<8x32xf32> to vector<8x32xbf16>
    %c0_1 = arith.constant 0 : index
    %c0_2 = arith.constant 0 : index
    %2 = vector.load %arg1[%c0_1, %c0_2] : memref<32x256xbf16, #tpu.memory_space<vmem>>, vector<32x256xbf16>
    %cst = arith.constant dense<0.000000e+00> : vector<8x256xf32>
    %3 = tpu.matmul %1, %2, %cst {dimension_numbers = #tpu.dot_dimension_numbers<[1], [0], [0], [1], [0, 0, 1, 1], [], []>} : vector<8x32xbf16>, vector<32x256xbf16>, vector<8x256xf32> -> vector<8x256xf32>
    %4 = vector.extract_strided_slice %3 {offsets = [0, 0], sizes = [8, 128], strides = [1, 1]} : vector<8x256xf32> to vector<8x128xf32>
    %5 = vector.extract_strided_slice %3 {offsets = [0, 128], sizes = [8, 128], strides = [1, 1]} : vector<8x256xf32> to vector<8x128xf32>
    %6 = arith.maximumf %4, %5 : vector<8x128xf32>
    %cst_3 = arith.constant 0.000000e+00 : f32
    %7 = vector.broadcast %cst_3 : f32 to vector<8x128xf32>
    %8 = arith.maximumf %6, %7 : vector<8x128xf32>
    %9 = arith.truncf %8 : vector<8x128xf32> to vector<8x128xbf16>
    %c0_4 = arith.constant 0 : index
    %c0_5 = arith.constant 0 : index
    %10 = vector.load %arg2[%c0_4, %c0_5] : memref<128x256xbf16, #tpu.memory_space<vmem>>, vector<128x256xbf16>
    %cst_6 = arith.constant dense<0.000000e+00> : vector<8x256xf32>
    %11 = tpu.matmul %9, %10, %cst_6 {dimension_numbers = #tpu.dot_dimension_numbers<[1], [0], [0], [1], [0, 0, 1, 1], [], []>} : vector<8x128xbf16>, vector<128x256xbf16>, vector<8x256xf32> -> vector<8x256xf32>
    %12 = vector.extract_strided_slice %11 {offsets = [0, 0], sizes = [8, 128], strides = [1, 1]} : vector<8x256xf32> to vector<8x128xf32>
    %13 = vector.extract_strided_slice %11 {offsets = [0, 128], sizes = [8, 128], strides = [1, 1]} : vector<8x256xf32> to vector<8x128xf32>
    %14 = arith.maximumf %12, %13 : vector<8x128xf32>
    %cst_7 = arith.constant 0.000000e+00 : f32
    %15 = vector.broadcast %cst_7 : f32 to vector<8x128xf32>
    %16 = arith.maximumf %14, %15 : vector<8x128xf32>
    %17 = arith.truncf %16 : vector<8x128xf32> to vector<8x128xbf16>
    %c0_8 = arith.constant 0 : index
    %c0_9 = arith.constant 0 : index
    %18 = vector.load %arg3[%c0_8, %c0_9] : memref<128x128xbf16, #tpu.memory_space<vmem>>, vector<128x128xbf16>
    %cst_10 = arith.constant dense<0.000000e+00> : vector<8x128xf32>
    %19 = tpu.matmul %17, %18, %cst_10 {dimension_numbers = #tpu.dot_dimension_numbers<[1], [0], [0], [1], [0, 0, 1, 1], [], []>} : vector<8x128xbf16>, vector<128x128xbf16>, vector<8x128xf32> -> vector<8x128xf32>
    %c0_11 = arith.constant 0 : index
    %c0_12 = arith.constant 0 : index
    %20 = vector.load %arg4[%c0_11, %c0_12] : memref<8x128xf32, #tpu.memory_space<vmem>>, vector<8x128xf32>
    tpu.vector_store %arg4[%c0_11, %c0_12], %19 {strides = array<i32>} : memref<8x128xf32, #tpu.memory_space<vmem>>, vector<8x128xf32>,
    return
  }
}

</mosaic_0001>

<llo_original>
// kernel: convnet_forward.1
$region0: #{convnet_forward.1}
  #allocation0 [shape = 'u32[]', space=smem, size = 0x4, offset = 0x4, fixed_abs, tag = 'smem constant byte address 0x4 - core index']
  #allocation1 [shape = 'u32[144,128]{1,0:T(1,128)}', space=vmem, size = 0x12000, scoped, tag = 'internal scratch']
  %s0 = inlined_call_operand.vmem [shape: f32[8,32], index: 0, kind: input, shape index: {}]
  %s1 = inlined_call_operand.hbm [shape: bf16[32,256], index: 1, kind: input, shape index: {}]
  %s2 = inlined_call_operand.hbm [shape: bf16[128,256], index: 2, kind: input, shape index: {}]
  %s3 = inlined_call_operand.hbm [shape: bf16[128,128], index: 3, kind: input, shape index: {}]
  %s4 = inlined_call_operand.vmem [shape: f32[8,128], index: 4, kind: output, shape index: {}]
  %s5 = sld [smem:[#allocation0]]
  $region38: #{convnet_forward.1} parent=0
    _
  %s7 = ssub.s32 1, %s5
  %s8 = scalar_select 0, %s7, %s5
  $region1: #{convnet_forward.1} parent=0
    #allocation2 [shape = 'u8[16384]{0}', space=vmem, size = 0x4000, scoped, tag = 'input window, operand 1, single buffered']
    #allocation3 [shape = 's32[1]{0}', space=sflag, size = 0x4, scoped, tag = 'scoped memory for convnet_forward.1']
    #allocation4 [shape = 'u8[65536]{0}', space=vmem, size = 0x10000, scoped, tag = 'input window, operand 2, single buffered']
    #allocation5 [shape = 's32[1]{0}', space=sflag, size = 0x4, scoped, tag = 'scoped memory for convnet_forward.1']
    #allocation6 [shape = 'u8[32768]{0}', space=vmem, size = 0x8000, scoped, tag = 'input window, operand 3, single buffered']
    %9 = vsyncpa [#allocation3], 0
    %10 = vsyncpa [#allocation5], 0
    // Predicated region
    $region2: #{convnet_forward.1} parent=1 // pred_check
      _
    $region3: #{convnet_forward.1} parent=1 // pred_check_branch
      %12 = sbr.rel (0) target = $region5
    $region4: #{convnet_forward.1} parent=1 // pred_region
      _
    $region5: #{convnet_forward.1} parent=1 // pred_fallthru
      _
    // Predicated region
    $region6: #{convnet_forward.1} parent=1 // pred_check
      _
    $region7: #{convnet_forward.1} parent=1 // pred_check_branch
      %14 = sbr.rel (0) target = $region9
    $region8: #{convnet_forward.1} parent=1 // pred_region
      %s16 = ssub.s32 512, 512
      %17 = vsyncadd [#allocation3], %s16
      %s18 = sshll.u32 [#allocation2], 4
      %s19 = int_to_ptr.vmem [resolvable:$true] %s18
      %24 = dma.hbm_to_vmem [thread:$0]  %s1, 512, %s19, [#allocation3], 128, 128, 8
    $region9: #{convnet_forward.1} parent=1 // pred_fallthru
      _
    // Predicated region
    $region10: #{convnet_forward.1} parent=1 // pred_check
      _
    $region11: #{convnet_forward.1} parent=1 // pred_check_branch
      %26 = sbr.rel (0) target = $region13
    $region12: #{convnet_forward.1} parent=1 // pred_region
      %s28 = ssub.s32 2048, 2048
      %29 = vsyncadd [#allocation5], %s28
      %s30 = sshll.u32 [#allocation4], 4
      %s31 = int_to_ptr.vmem [resolvable:$true] %s30
      %36 = dma.hbm_to_vmem [thread:$0]  %s2, 2048, %s31, [#allocation5], 128, 128, 8
    $region13: #{convnet_forward.1} parent=1 // pred_fallthru
      _
    // Predicated region
    $region14: #{convnet_forward.1} parent=1 // pred_check
      _
    $region15: #{convnet_forward.1} parent=1 // pred_check_branch
      %38 = sbr.rel (0) target = $region17
    $region16: #{convnet_forward.1} parent=1 // pred_region
      %s40 = ssub.s32 1024, 1024
      %41 = vsyncadd [#allocation5], %s40
      %s42 = sshll.u32 [#allocation6], 4
      %s43 = int_to_ptr.vmem [resolvable:$true] %s42
      %48 = dma.hbm_to_vmem [thread:$0]  %s3, 1024, %s43, [#allocation5], 64, 64, 4
    $region17: #{convnet_forward.1} parent=1 // pred_fallthru
      _
    // Predicated region
    $region18: #{convnet_forward.1} parent=1 // pred_check
      _
    $region19: #{convnet_forward.1} parent=1 // pred_check_branch
      %50 = sbr.rel (0) target = $region21
    $region20: #{convnet_forward.1} parent=1 // pred_region
      %51 = dma.done [#allocation3], 512
    $region21: #{convnet_forward.1} parent=1 // pred_fallthru
      _
    // Predicated region
    $region22: #{convnet_forward.1} parent=1 // pred_check
      _
    $region23: #{convnet_forward.1} parent=1 // pred_check_branch
      %53 = sbr.rel (0) target = $region25
    $region24: #{convnet_forward.1} parent=1 // pred_region
      %54 = dma.done [#allocation5], 2048
    $region25: #{convnet_forward.1} parent=1 // pred_fallthru
      _
    // Predicated region
    $region26: #{convnet_forward.1} parent=1 // pred_check
      _
    $region27: #{convnet_forward.1} parent=1 // pred_check_branch
      %56 = sbr.rel (0) target = $region29
    $region28: #{convnet_forward.1} parent=1 // pred_region
      %57 = dma.done [#allocation5], 1024
    $region29: #{convnet_forward.1} parent=1 // pred_fallthru
      _
    %v59 = vld [vmem:[%s0] sm:$0xff]
    %v60 = vpack.c.bf16 %v59, %v59
    %v61 = vld [vmem:[#allocation2] sm:$0xff]
    %v62 = vld [vmem:[#allocation2 + $0x8] sm:$0xff]
    %v63 = vld [vmem:[#allocation2 + $0x10] sm:$0xff]
    %v64 = vld [vmem:[#allocation2 + $0x18] sm:$0xff]
    %v69 = vunpack.c.l.b16 %v61
    %v70 = vunpack.c.h.b16 %v61
    %v71 = vunpack.c.l.b16 %v62
    %v72 = vunpack.c.h.b16 %v62
    %v73 = vunpack.c.l.b16 %v63
    %v74 = vunpack.c.h.b16 %v63
    %v75 = vunpack.c.l.b16 %v64
    %v76 = vunpack.c.h.b16 %v64
    %v77 = vpack.c.b16 %v71, %v69
    %v78 = vpack.c.b16 %v72, %v70
    %v79 = vpack.c.b16 %v75, %v73
    %v80 = vpack.c.b16 %v76, %v74
    %vm85 = vcmask 261120
    %v87 = vsel %vm85, %v60, 0
    %89 = vmatprep.subr.bf16.mxu0 %v78
    %90 = vmatpush1.bf16.msra.mxu0 %v77
    %91 = vmatprep.subr.bf16.mxu0 %v80
    %92 = vmatpush1.bf16.msra.mxu0 %v79
    %93 = vmatprep.subr.bf16.mxu0 0
    %94 = vmatpush1.bf16.msra.mxu0 0
    %95 = vmatprep.subr.bf16.mxu0 0
    %96 = vmatpush1.bf16.msra.mxu0 0
    %97 = vmatprep.subr.bf16.mxu0 0
    %98 = vmatpush1.bf16.msra.mxu0 0
    %99 = vmatprep.subr.bf16.mxu0 0
    %100 = vmatpush1.bf16.msra.mxu0 0
    %101 = vmatprep.subr.bf16.mxu0 0
    %102 = vmatpush1.bf16.msra.mxu0 0
    %103 = vmatprep.subr.bf16.mxu0 0
    %104 = vmatpush1.bf16.msra.mxu0 0
    %105 = vmatprep.subr.bf16.mxu0 0
    %106 = vmatpush1.bf16.msra.mxu0 0
    %107 = vmatprep.subr.bf16.mxu0 0
    %108 = vmatpush1.bf16.msra.mxu0 0
    %109 = vmatprep.subr.bf16.mxu0 0
    %110 = vmatpush1.bf16.msra.mxu0 0
    %111 = vmatprep.subr.bf16.mxu0 0
    %112 = vmatpush1.bf16.msra.mxu0 0
    %113 = vmatprep.subr.bf16.mxu0 0
    %114 = vmatpush1.bf16.msra.mxu0 0
    %115 = vmatprep.subr.bf16.mxu0 0
    %116 = vmatpush1.bf16.msra.mxu0 0
    %117 = vmatprep.subr.bf16.mxu0 0
    %118 = vmatpush1.bf16.msra.mxu0 0
    %119 = vmatprep.subr.bf16.mxu0 0
    %120 = vmatpush1.bf16.msra.mxu0 0
    %121 = vmatprep.mubr.bf16.mxu0 0
    %122 = vmatmul.mubr.bf16.gmra.mrb[0].mxu0 %v87
    %v123 = vpop.f32.mrb[0].mxu0
    %v124 = vadd.f32 0.0, %v123
    %v125 = vpop.f32.mrb[0].mxu0
    %v126 = vadd.f32 0.0, %v125
    %v127 = vpop.f32.mrb[0].mxu0
    %v128 = vpop.f32.mrb[0].mxu0
    %129 = vdwg.mxu0
    %v130 = vmax.f32 %v124, %v126
    %v131 = vmax.f32 %v130, 0.0
    %v132 = vpack.c.bf16 %v131, %v131
    %v133 = vld [vmem:[#allocation4] sm:$0xff]
    %v134 = vld [vmem:[#allocation4 + $0x8] sm:$0xff]
    %v135 = vld [vmem:[#allocation4 + $0x10] sm:$0xff]
    %v136 = vld [vmem:[#allocation4 + $0x18] sm:$0xff]
    %v137 = vld [vmem:[#allocation4 + $0x20] sm:$0xff]
    %v138 = vld [vmem:[#allocation4 + $0x28] sm:$0xff]
    %v139 = vld [vmem:[#allocation4 + $0x30] sm:$0xff]
    %v140 = vld [vmem:[#allocation4 + $0x38] sm:$0xff]
    %v141 = vld [vmem:[#allocation4 + $0x40] sm:$0xff]
    %v142 = vld [vmem:[#allocation4 + $0x48] sm:$0xff]
    %v143 = vld [vmem:[#allocation4 + $0x50] sm:$0xff]
    %v144 = vld [vmem:[#allocation4 + $0x58] sm:$0xff]
    %v145 = vld [vmem:[#allocation4 + $0x60] sm:$0xff]
    %v146 = vld [vmem:[#allocation4 + $0x68] sm:$0xff]
    %v147 = vld [vmem:[#allocation4 + $0x70] sm:$0xff]
    %v148 = vld [vmem:[#allocation4 + $0x78] sm:$0xff]
    %v165 = vunpack.c.l.b16 %v133
    %v166 = vunpack.c.h.b16 %v133
    %v167 = vunpack.c.l.b16 %v134
    %v168 = vunpack.c.h.b16 %v134
    %v169 = vunpack.c.l.b16 %v135
    %v170 = vunpack.c.h.b16 %v135
    %v171 = vunpack.c.l.b16 %v136
    %v172 = vunpack.c.h.b16 %v136
    %v173 = vunpack.c.l.b16 %v137
    %v174 = vunpack.c.h.b16 %v137
    %v175 = vunpack.c.l.b16 %v138
    %v176 = vunpack.c.h.b16 %v138
    %v177 = vunpack.c.l.b16 %v139
    %v178 = vunpack.c.h.b16 %v139
    %v179 = vunpack.c.l.b16 %v140
    %v180 = vunpack.c.h.b16 %v140
    %v181 = vunpack.c.l.b16 %v141
    %v182 = vunpack.c.h.b16 %v141
    %v183 = vunpack.c.l.b16 %v142
    %v184 = vunpack.c.h.b16 %v142
    %v185 = vunpack.c.l.b16 %v143
    %v186 = vunpack.c.h.b16 %v143
    %v187 = vunpack.c.l.b16 %v144
    %v188 = vunpack.c.h.b16 %v144
    %v189 = vunpack.c.l.b16 %v145
    %v190 = vunpack.c.h.b16 %v145
    %v191 = vunpack.c.l.b16 %v146
    %v192 = vunpack.c.h.b16 %v146
    %v193 = vunpack.c.l.b16 %v147
    %v194 = vunpack.c.h.b16 %v147
    %v195 = vunpack.c.l.b16 %v148
    %v196 = vunpack.c.h.b16 %v148
    %v197 = vpack.c.b16 %v167, %v165
    %v198 = vpack.c.b16 %v168, %v166
    %v199 = vpack.c.b16 %v171, %v169
    %v200 = vpack.c.b16 %v172, %v170
    %v201 = vpack.c.b16 %v175, %v173
    %v202 = vpack.c.b16 %v176, %v174
    %v203 = vpack.c.b16 %v179, %v177
    %v204 = vpack.c.b16 %v180, %v178
    %v205 = vpack.c.b16 %v183, %v181
    %v206 = vpack.c.b16 %v184, %v182
    %v207 = vpack.c.b16 %v187, %v185
    %v208 = vpack.c.b16 %v188, %v186
    %v209 = vpack.c.b16 %v191, %v189
    %v210 = vpack.c.b16 %v192, %v190
    %v211 = vpack.c.b16 %v195, %v193
    %v212 = vpack.c.b16 %v196, %v194
    %229 = vmatprep.subr.bf16.mxu0 %v198
    %230 = vmatpush1.bf16.msra.mxu0 %v197
    %231 = vmatprep.subr.bf16.mxu0 %v200
    %232 = vmatpush1.bf16.msra.mxu0 %v199
    %233 = vmatprep.subr.bf16.mxu0 %v202
    %234 = vmatpush1.bf16.msra.mxu0 %v201
    %235 = vmatprep.subr.bf16.mxu0 %v204
    %236 = vmatpush1.bf16.msra.mxu0 %v203
    %237 = vmatprep.subr.bf16.mxu0 %v206
    %238 = vmatpush1.bf16.msra.mxu0 %v205
    %239 = vmatprep.subr.bf16.mxu0 %v208
    %240 = vmatpush1.bf16.msra.mxu0 %v207
    %241 = vmatprep.subr.bf16.mxu0 %v210
    %242 = vmatpush1.bf16.msra.mxu0 %v209
    %243 = vmatprep.subr.bf16.mxu0 %v212
    %244 = vmatpush1.bf16.msra.mxu0 %v211
    %245 = vmatprep.subr.bf16.mxu0 0
    %246 = vmatpush1.bf16.msra.mxu0 0
    %247 = vmatprep.subr.bf16.mxu0 0
    %248 = vmatpush1.bf16.msra.mxu0 0
    %249 = vmatprep.subr.bf16.mxu0 0
    %250 = vmatpush1.bf16.msra.mxu0 0
    %251 = vmatprep.subr.bf16.mxu0 0
    %252 = vmatpush1.bf16.msra.mxu0 0
    %253 = vmatprep.subr.bf16.mxu0 0
    %254 = vmatpush1.bf16.msra.mxu0 0
    %255 = vmatprep.subr.bf16.mxu0 0
    %256 = vmatpush1.bf16.msra.mxu0 0
    %257 = vmatprep.subr.bf16.mxu0 0
    %258 = vmatpush1.bf16.msra.mxu0 0
    %259 = vmatprep.subr.bf16.mxu0 0
    %260 = vmatpush1.bf16.msra.mxu0 0
    %261 = vmatprep.mubr.bf16.mxu0 0
    %262 = vmatmul.mubr.bf16.gmra.mrb[0].mxu0 %v132
    %v263 = vpop.f32.mrb[0].mxu0
    %v264 = vadd.f32 0.0, %v263
    %v265 = vpop.f32.mrb[0].mxu0
    %v266 = vadd.f32 0.0, %v265
    %v267 = vpop.f32.mrb[0].mxu0
    %v268 = vpop.f32.mrb[0].mxu0
    %269 = vdwg.mxu0
    %v270 = vmax.f32 %v264, %v266
    %v271 = vmax.f32 %v270, 0.0
    %v272 = vpack.c.bf16 %v271, %v271
    %v273 = vld [vmem:[#allocation6] sm:$0xf]
    %v274 = vld [vmem:[#allocation6 + $0x4] sm:$0xf]
    %v275 = vld [vmem:[#allocation6 + $0x8] sm:$0xf]
    %v276 = vld [vmem:[#allocation6 + $0xc] sm:$0xf]
    %v277 = vld [vmem:[#allocation6 + $0x10] sm:$0xf]
    %v278 = vld [vmem:[#allocation6 + $0x14] sm:$0xf]
    %v279 = vld [vmem:[#allocation6 + $0x18] sm:$0xf]
    %v280 = vld [vmem:[#allocation6 + $0x1c] sm:$0xf]
    %v281 = vld [vmem:[#allocation6 + $0x20] sm:$0xf]
    %v282 = vld [vmem:[#allocation6 + $0x24] sm:$0xf]
    %v283 = vld [vmem:[#allocation6 + $0x28] sm:$0xf]
    %v284 = vld [vmem:[#allocation6 + $0x2c] sm:$0xf]
    %v285 = vld [vmem:[#allocation6 + $0x30] sm:$0xf]
    %v286 = vld [vmem:[#allocation6 + $0x34] sm:$0xf]
    %v287 = vld [vmem:[#allocation6 + $0x38] sm:$0xf]
    %v288 = vld [vmem:[#allocation6 + $0x3c] sm:$0xf]
    %v305 = vunpack.c.l.b16 %v273
    %v306 = vunpack.c.l.b16 %v274
    %v307 = vunpack.c.l.b16 %v275
    %v308 = vunpack.c.l.b16 %v276
    %v309 = vunpack.c.l.b16 %v277
    %v310 = vunpack.c.l.b16 %v278
    %v311 = vunpack.c.l.b16 %v279
    %v312 = vunpack.c.l.b16 %v280
    %v313 = vunpack.c.l.b16 %v281
    %v314 = vunpack.c.l.b16 %v282
    %v315 = vunpack.c.l.b16 %v283
    %v316 = vunpack.c.l.b16 %v284
    %v317 = vunpack.c.l.b16 %v285
    %v318 = vunpack.c.l.b16 %v286
    %v319 = vunpack.c.l.b16 %v287
    %v320 = vunpack.c.l.b16 %v288
    %v321 = vpack.c.b16 %v306, %v305
    %v322 = vpack.c.b16 %v308, %v307
    %v323 = vpack.c.b16 %v310, %v309
    %v324 = vpack.c.b16 %v312, %v311
    %v325 = vpack.c.b16 %v314, %v313
    %v326 = vpack.c.b16 %v316, %v315
    %v327 = vpack.c.b16 %v318, %v317
    %v328 = vpack.c.b16 %v320, %v319
    %337 = vmatprep.subr.bf16.mxu0 0
    %338 = vmatpush1.bf16.msra.mxu0 %v321
    %339 = vmatprep.subr.bf16.mxu0 0
    %340 = vmatpush1.bf16.msra.mxu0 %v322
    %341 = vmatprep.subr.bf16.mxu0 0
    %342 = vmatpush1.bf16.msra.mxu0 %v323
    %343 = vmatprep.subr.bf16.mxu0 0
    %344 = vmatpush1.bf16.msra.mxu0 %v324
    %345 = vmatprep.subr.bf16.mxu0 0
    %346 = vmatpush1.bf16.msra.mxu0 %v325
    %347 = vmatprep.subr.bf16.mxu0 0
    %348 = vmatpush1.bf16.msra.mxu0 %v326
    %349 = vmatprep.subr.bf16.mxu0 0
    %350 = vmatpush1.bf16.msra.mxu0 %v327
    %351 = vmatprep.subr.bf16.mxu0 0
    %352 = vmatpush1.bf16.msra.mxu0 %v328
    %353 = vmatprep.subr.bf16.mxu0 0
    %354 = vmatpush1.bf16.msra.mxu0 0
    %355 = vmatprep.subr.bf16.mxu0 0
    %356 = vmatpush1.bf16.msra.mxu0 0
    %357 = vmatprep.subr.bf16.mxu0 0
    %358 = vmatpush1.bf16.msra.mxu0 0
    %359 = vmatprep.subr.bf16.mxu0 0
    %360 = vmatpush1.bf16.msra.mxu0 0
    %361 = vmatprep.subr.bf16.mxu0 0
    %362 = vmatpush1.bf16.msra.mxu0 0
    %363 = vmatprep.subr.bf16.mxu0 0
    %364 = vmatpush1.bf16.msra.mxu0 0
    %365 = vmatprep.subr.bf16.mxu0 0
    %366 = vmatpush1.bf16.msra.mxu0 0
    %367 = vmatprep.subr.bf16.mxu0 0
    %368 = vmatpush1.bf16.msra.mxu0 0
    %369 = vmatprep.mubr.bf16.mxu0 0
    %370 = vmatmul.mubr.bf16.gmra.mrb[0].mxu0 %v272
    %v371 = vpop.f32.mrb[0].mxu0
    %v372 = vadd.f32 0.0, %v371
    %v373 = vpop.f32.mrb[0].mxu0
    %v374 = vpop.f32.mrb[0].mxu0
    %v375 = vpop.f32.mrb[0].mxu0
    %376 = vdwg.mxu0
    %377 = vst [vmem:[%s4] sm:$0xff] %v372
    // Predicated region
    $region30: #{convnet_forward.1} parent=1 // pred_check
      _
    $region31: #{convnet_forward.1} parent=1 // pred_check_branch
      %379 = sbr.rel (0) target = $region33
    $region32: #{convnet_forward.1} parent=1 // pred_region
      _
    $region33: #{convnet_forward.1} parent=1 // pred_fallthru
      _
    // Predicated region
    $region34: #{convnet_forward.1} parent=1 // pred_check
      _
    $region35: #{convnet_forward.1} parent=1 // pred_check_branch
      %381 = sbr.rel (0) target = $region37
    $region36: #{convnet_forward.1} parent=1 // pred_region
      _
    $region37: #{convnet_forward.1} parent=1 // pred_fallthru
      _
    %382 = vsyncpa [#allocation3], 1
    %383 = vsyncpa [#allocation5], 1

</llo_original>
